<compile_context>
chip_gen: v7x
topology: tpu7x:2x2x1
jax: 0.10.0
libtpu: 0.0.40
codegen_flags: <defaults>
</compile_context>

<pallas_src>
import functools

import jax
import jax.numpy as jnp
from jax.experimental import pallas as pl
from jax.experimental.pallas import tpu as pltpu


def _cdiv(a, b):
    return -(-a // b)


def _round_up(x, m):
    return _cdiv(x, m) * m


def _pad_to(x, shape):
    pads = [(0, s - d) for d, s in zip(x.shape, shape)]
    if any(hi for _, hi in pads):
        return jnp.pad(x, pads)
    return x


# ---------------------------------------------------------------------------
# Prologue kernel: per-row inverse Lp norm (clamped like
# torch.nn.functional.normalize: x / max(norm, 1e-12)).  Runs at the input
# precision, output is f32.
# ---------------------------------------------------------------------------
def _inv_norm_kernel(x_ref, o_ref, *, p):
    # x_ref: (1, TN, D) block, o_ref: (1, TN, 1)
    x = x_ref[0].astype(jnp.float32)
    if p == 2.0:
        n = jnp.sqrt(jnp.sum(x * x, axis=-1, keepdims=True))
    elif p == 1.0:
        n = jnp.sum(jnp.abs(x), axis=-1, keepdims=True)
    else:
        n = jnp.power(jnp.sum(jnp.abs(x) ** p, axis=-1, keepdims=True), 1.0 / p)
    o_ref[0] = 1.0 / jnp.maximum(n, 1e-12)


def _compute_inv_norms(emb, p, tile_n):
    """emb: (B, N_pad, D_pad) -> inverse Lp norms (B, N_pad, 1) in f32."""
    B, N, D = emb.shape
    return pl.pallas_call(
        functools.partial(_inv_norm_kernel, p=float(p)),
        out_shape=jax.ShapeDtypeStruct((B, N, 1), jnp.float32),
        grid_spec=pltpu.PrefetchScalarGridSpec(
            num_scalar_prefetch=0,
            grid=(B, N // tile_n),
            in_specs=[pl.BlockSpec((1, tile_n, D), lambda b, i: (b, i, 0))],
            out_specs=pl.BlockSpec((1, tile_n, 1), lambda b, i: (b, i, 0)),
        ),
        compiler_params=pltpu.CompilerParams(
            dimension_semantics=("parallel", "parallel"),
            vmem_limit_bytes=32 * 1024 * 1024,
        ),
    )(emb)


# ---------------------------------------------------------------------------
# Power epilogue helper: integer powers via square-and-multiply (VALU),
# power=0.5 via sqrt, general fractional powers via ** (EUP).
# ---------------------------------------------------------------------------
def _apply_power(mat, power):
    power = float(power)
    if power == 1.0:
        return mat
    if power == 0.5:
        return jnp.sqrt(mat)
    if power.is_integer() and 2.0 <= power <= 32.0:
        p = int(power)
        result = None
        base = mat
        while p > 0:
            if p & 1:
                result = base if result is None else result * base
            p >>= 1
            if p > 0:
                base = base * base
        return result
    return mat ** power


# ---------------------------------------------------------------------------
# Main kernel: tiled similarity matmul.  Accumulates directly into the
# resident f32 output block when K is split (n_k_steps > 1); single-pass
# (no read-back) otherwise.  Normalization + power applied in the epilogue.
# ---------------------------------------------------------------------------
def _sim_matmul_kernel(*refs, power, normalize, n_k_steps):
    if normalize:
        q_ref, r_ref, iq_ref, ir_ref, o_ref = refs
    else:
        q_ref, r_ref, o_ref = refs

    # (TQ, TK) x (TN, TK) contracted on the shared last (lane) dim; operands
    # stay in their (possibly bf16) tile dtype, accumulation in f32 on MXU.
    prod = jax.lax.dot_general(
        q_ref[0],
        r_ref[0],
        dimension_numbers=(((1,), (1,)), ((), ())),
        preferred_element_type=jnp.float32,
    )

    def epilogue(mat):
        if normalize:
            mat = mat * iq_ref[0]   # (TQ, 1) inverse query norms
            mat = mat * ir_ref[0]   # (1, TN) inverse reference norms
        return _apply_power(mat, power)

    if n_k_steps == 1:
        # Single MXU pass: no accumulator, no output read-back.
        o_ref[0] = epilogue(prod).astype(o_ref.dtype)
    else:
        k = pl.program_id(3)

        @pl.when(k == 0)
        def _():
            o_ref[0] = prod          # first partial: write, don't zero+add

        @pl.when(k > 0)
        def _():
            o_ref[0] += prod

        @pl.when(k == n_k_steps - 1)
        def _():
            o_ref[0] = epilogue(o_ref[0]).astype(o_ref.dtype)


# ---------------------------------------------------------------------------
# Tile selection: lane-dense output tiles, minimal row padding, K padded only
# to 128, tk a divisor of d_pad, all within a conservative VMEM budget so the
# depth-2 pipeline survives even on v7x (64 MiB physical) / v5e (16 MiB scoped
# default).
# ---------------------------------------------------------------------------
def _choose_tiles(Nq, Nr, D, op_bytes, self_sim, *,
                  tq_max=512, tn_max=512, max_tk=None,
                  vmem_budget=12 * 1024 * 1024):
    d_pad = _round_up(D, 128)

    # Row tiles: target tq_max/tn_max but shrink to the smallest tile that
    # keeps the same tile count (minimizes padded rows).
    tn = _round_up(_cdiv(Nr, _cdiv(Nr, tn_max)), 128)
    if self_sim:
        tq = tn                      # share padded array + norms for both operands
    else:
        tq = _round_up(_cdiv(Nq, _cdiv(Nq, tq_max)), 8)

    # tk candidates: divisors of d_pad that are multiples of 128, largest first.
    m = d_pad // 128
    tk_options = sorted({(m // g) * 128 for g in range(1, m + 1) if m % g == 0},
                        reverse=True)
    if max_tk is not None:
        tk_options = [t for t in tk_options if t <= max_tk] or [128]

    def est(tq_, tn_, tk_):
        e = 2 * (tq_ * tk_ + tn_ * tk_) * op_bytes   # double-buffered q/r tiles
        e += 2 * tq_ * tn_ * 4                       # f32 output tile
        e += 2 * (tq_ + tn_) * 4                     # inverse-norm tiles
        return e

    while True:
        for cand in tk_options:
            if est(tq, tn, cand) <= vmem_budget:
                return tq, tn, cand, d_pad
        # Even tk=128 does not fit: shrink row tiles and retry.
        if tn > 128:
            tn = max(128, _round_up(tn // 2, 128))
            if self_sim:
                tq = tn
        elif tq > 8 and not self_sim:
            tq = max(8, _round_up(tq // 2, 8))
        else:
            return tq, tn, 128, d_pad


# ---------------------------------------------------------------------------
# Wrapper
# ---------------------------------------------------------------------------
def base_distance_forward(
    query_emb,
    ref_emb=None,
    *,
    normalize_embeddings=True,
    p=2,
    power=1,
    is_inverted=True,
    mxu_dtype=jnp.bfloat16,
    tq_max=512,
    tn_max=512,
    max_tk=None,
):
    """Pallas implementation of BaseDistance.forward (dot-product similarity)."""
    # _check_params equivalent.
    if not isinstance(normalize_embeddings, bool):
        raise ValueError("normalize_embeddings must be of type <bool>.")
    if not isinstance(p, (int, float)) or p <= 0:
        raise ValueError(f"p should be an int or float > 0, but got {p}.")
    if not isinstance(power, (int, float)) or power <= 0:
        raise ValueError(f"power should be an int or float > 0, but got {power}.")
    del is_inverted  # does not change forward()'s output

    self_sim = ref_emb is None
    if self_sim:
        ref_emb = query_emb

    B, Nq, D = query_emb.shape
    Br, Nr, Dr = ref_emb.shape
    assert B == Br and D == Dr

    # MXU operand dtype: never up-cast; down-cast f32 -> mxu_dtype (bf16 by
    # default) so the MXU runs at rated throughput and q/r DMA bytes halve.
    if mxu_dtype is None or (
        jnp.dtype(query_emb.dtype).itemsize <= jnp.dtype(mxu_dtype).itemsize
    ):
        op_dtype = query_emb.dtype
    else:
        op_dtype = jnp.dtype(mxu_dtype)

    tq, tn, tk, d_pad = _choose_tiles(
        Nq, Nr, D, jnp.dtype(op_dtype).itemsize, self_sim,
        tq_max=tq_max, tn_max=tn_max, max_tk=max_tk,
    )
    n_k = d_pad // tk

    nr_pad = _round_up(Nr, tn)
    nq_pad = nr_pad if self_sim else _round_up(Nq, tq)

    # Zero-pad (zeros don't change norms; padded rows yield 0 rows, sliced off).
    q_pad = _pad_to(query_emb, (B, nq_pad, d_pad))
    r_pad = q_pad if self_sim else _pad_to(ref_emb, (B, nr_pad, d_pad))

    # Inverse Lp norms at input precision (before the MXU-dtype cast).
    if normalize_embeddings:
        inv_q = _compute_inv_norms(q_pad, p, tq)                  # (B, Nq_pad, 1)
        inv_r = inv_q if self_sim else _compute_inv_norms(r_pad, p, tn)
        inv_r_t = jnp.swapaxes(inv_r, 1, 2)                       # (B, 1, Nr_pad)

    # Cast matmul operands for the MXU.
    q_op = q_pad.astype(op_dtype)
    r_op = q_op if self_sim else r_pad.astype(op_dtype)

    inputs = [q_op, r_op]
    in_specs = [
        pl.BlockSpec((1, tq, tk), lambda b, i, j, k: (b, i, k)),
        pl.BlockSpec((1, tn, tk), lambda b, i, j, k: (b, j, k)),
    ]
    if normalize_embeddings:
        inputs += [inv_q, inv_r_t]
        in_specs += [
            pl.BlockSpec((1, tq, 1), lambda b, i, j, k: (b, i, 0)),
            pl.BlockSpec((1, 1, tn), lambda b, i, j, k: (b, 0, j)),
        ]

    grid = (B, nq_pad // tq, nr_pad // tn, n_k)

    kernel = functools.partial(
        _sim_matmul_kernel,
        power=float(power),
        normalize=bool(normalize_embeddings),
        n_k_steps=n_k,
    )

    out = pl.pallas_call(
        kernel,
        # f32 output: needed for in-place accumulation when K is split and
        # matches torch semantics for f32 inputs.
        out_shape=jax.ShapeDtypeStruct((B, nq_pad, nr_pad), jnp.float32),
        grid_spec=pltpu.PrefetchScalarGridSpec(
            num_scalar_prefetch=0,
            grid=grid,
            in_specs=in_specs,
            out_specs=pl.BlockSpec((1, tq, tn), lambda b, i, j, k: (b, i, j)),
        ),
        compiler_params=pltpu.CompilerParams(
            dimension_semantics=("parallel", "parallel", "parallel", "arbitrary"),
            vmem_limit_bytes=32 * 1024 * 1024,
        ),
    )(*inputs)

    out = out[:, :Nq, :Nr]
    assert out.shape == (B, Nq, Nr)
    return out


# ---------------------------------------------------------------------------
# Pure-JAX reference
# ---------------------------------------------------------------------------
def _reference(query_emb, ref_emb, *, normalize_embeddings=True, p=2, power=1):
    def norm(x):
        n = jnp.power(jnp.sum(jnp.abs(x) ** p, axis=-1, keepdims=True), 1.0 / p)
        return x / jnp.maximum(n, 1e-12)

    q = norm(query_emb) if normalize_embeddings else query_emb
    r = norm(ref_emb) if normalize_embeddings else ref_emb
    mat = jnp.einsum("bqd,brd->bqr", q, r, precision=jax.lax.Precision.HIGHEST)
    if power != 1:
        mat = mat ** power
    return mat


if __name__ == "__main__":
    key = jax.random.PRNGKey(0)
    kq, kr, kq2 = jax.random.split(key, 3)

    B, Nq, Nr, D = 2, 8, 16, 32
    query_emb = jax.random.normal(kq, (B, Nq, D), dtype=jnp.float32)
    ref_emb = jax.random.normal(kr, (B, Nr, D), dtype=jnp.float32)

    # 1) default path: normalized cosine similarity, bf16 MXU operands.
    out = jax.block_until_ready(base_distance_forward(query_emb, ref_emb))
    ref = _reference(query_emb, ref_emb)
    assert out.shape == (B, Nq, Nr)
    assert jnp.allclose(out, ref, atol=2e-2, rtol=2e-2)

    # 2) full-precision MXU path, tight tolerance.
    out32 = jax.block_until_ready(
        base_distance_forward(query_emb, ref_emb, mxu_dtype=jnp.float32)
    )
    assert jnp.allclose(out32, ref, atol=1e-5, rtol=1e-5)

    # 3) no normalization + integer power (square-and-multiply epilogue).
    out_pw = jax.block_until_ready(
        base_distance_forward(
            query_emb, ref_emb, normalize_embeddings=False, power=2,
            mxu_dtype=jnp.float32,
        )
    )
    ref_pw = _reference(query_emb, ref_emb, normalize_embeddings=False, power=2)
    assert jnp.allclose(out_pw, ref_pw, atol=1e-4, rtol=1e-5)

    # 4) ref_emb=None (self-similarity) path.
    out_self = jax.block_until_ready(
        base_distance_forward(query_emb, mxu_dtype=jnp.float32)
    )
    ref_self = _reference(query_emb, query_emb)
    assert out_self.shape == (B, Nq, Nq)
    assert jnp.allclose(out_self, ref_self, atol=1e-5, rtol=1e-5)

    # 5) forced K-split to exercise the in-place output accumulation path.
    D2 = 256
    q2 = jax.random.normal(kq2, (B, Nq, D2), dtype=jnp.float32)
    r2 = jax.random.normal(kr, (B, Nr, D2), dtype=jnp.float32)
    out_ks = jax.block_until_ready(
        base_distance_forward(q2, r2, mxu_dtype=jnp.float32, max_tk=128)
    )
    ref_ks = _reference(q2, r2)
    assert jnp.allclose(out_ks, ref_ks, atol=1e-4, rtol=1e-4)

    print("KERNEL_OK")
</pallas_src>

<mosaic_0001>
module attributes {stable_mosaic.version = 11 : i64} {
  func.func @_inv_norm_kernel(%arg0: i32, %arg1: i32, %arg2: memref<1x8x128xf32, #tpu.memory_space<vmem>>, %arg3: memref<1x8x1xf32, #tpu.memory_space<vmem>>) attributes {dimension_semantics = [#tpu.dimension_semantics<parallel>, #tpu.dimension_semantics<parallel>], iteration_bounds = array<i64: 2, 1>, scalar_prefetch = 0 : i64, scratch_operands = 0 : i64, tpu.core_type = #tpu.core_type<tc>, window_params = [{transform_indices = @transform_0, window_bounds = array<i64: 1, 8, 128>}, {transform_indices = @transform_1, window_bounds = array<i64: 1, 8, 1>}]} {
    %c0 = arith.constant 0 : index
    %c0_0 = arith.constant 0 : index
    %c0_1 = arith.constant 0 : index
    %0 = vector.load %arg2[%c0, %c0_0, %c0_1] : memref<1x8x128xf32, #tpu.memory_space<vmem>>, vector<1x8x128xf32>
    %1 = vector.shape_cast %0 : vector<1x8x128xf32> to vector<8x128xf32>
    %2 = arith.mulf %1, %1 : vector<8x128xf32>
    %cst = arith.constant dense<0.000000e+00> : vector<8xf32>
    %3 = vector.multi_reduction <add>, %2, %cst [1] : vector<8x128xf32> to vector<8xf32>
    %4 = vector.shape_cast %3 : vector<8xf32> to vector<8x1xf32>
    %5 = math.sqrt %4 : vector<8x1xf32>
    %cst_2 = arith.constant 9.99999996E-13 : f32
    %6 = vector.broadcast %cst_2 : f32 to vector<8x1xf32>
    %7 = arith.maximumf %5, %6 : vector<8x1xf32>
    %cst_3 = arith.constant 1.000000e+00 : f32
    %8 = vector.broadcast %cst_3 : f32 to vector<8x1xf32>
    %9 = arith.divf %8, %7 : vector<8x1xf32>
    %c0_4 = arith.constant 0 : index
    %c0_5 = arith.constant 0 : index
    %c0_6 = arith.constant 0 : index
    %10 = vector.load %arg3[%c0_4, %c0_5, %c0_6] : memref<1x8x1xf32, #tpu.memory_space<vmem>>, vector<1x8x1xf32>
    %11 = vector.shape_cast %10 : vector<1x8x1xf32> to vector<8x1xf32>
    %12 = vector.shape_cast %9 : vector<8x1xf32> to vector<1x8x1xf32>
    tpu.vector_store %arg3[%c0_4, %c0_5, %c0_6], %12 {strides = array<i32>} : memref<1x8x1xf32, #tpu.memory_space<vmem>>, vector<1x8x1xf32>,
    return
  }
  func.func @transform_0(%arg0: i32, %arg1: i32) -> (i32, i32, i32) {
    %c0_i32 = arith.constant 0 : i32
    %c0_i32_0 = arith.constant 0 : i32
    return %arg0, %arg1, %c0_i32 : i32, i32, i32
  }
  func.func @transform_1(%arg0: i32, %arg1: i32) -> (i32, i32, i32) {
    %c0_i32 = arith.constant 0 : i32
    %c0_i32_0 = arith.constant 0 : i32
    return %arg0, %arg1, %c0_i32 : i32, i32, i32
  }
}

</mosaic_0001>

<llo_original>
// kernel: tpu_custom_call.1
$region0: #{tpu_custom_call.1}
  #allocation0 [shape = 'u32[]', space=smem, size = 0x4, offset = 0x4, fixed_abs, tag = 'smem constant byte address 0x4 - core index']
  #allocation1 [shape = 'u32[144,128]{1,0:T(1,128)}', space=vmem, size = 0x12000, scoped, tag = 'internal scratch']
  %s0 = inlined_call_operand.hbm [shape: f32[2,8,128], index: 0, kind: input, shape index: {}]
  %s1 = inlined_call_operand.vmem [shape: f32[2,8,1], index: 1, kind: output, shape index: {}]
  %s2 = sld [smem:[#allocation0]]
  $region41: #{tpu_custom_call.1} parent=0
    _
  %s4 = ssub.s32 1, %s2
  %s5 = scalar_select 0, %s4, %s2
  $region1: #{tpu_custom_call.1} parent=0
    #allocation2 [shape = 'u8[8192]{0}', space=vmem, size = 0x2000, scoped, tag = 'input window, operand 0']
    #allocation3 [shape = 's32[2]{0}', space=sflag, size = 0x8, scoped, tag = 'scoped memory for tpu_custom_call.1']
    %6 = vsyncpa [#allocation3], 0
    %s7 = scalar_lea.sflag [#allocation3], 1
    %8 = vsyncpa %s7, 0
    loop: start=0, step=1, limit=4
    $region2: #{tpu_custom_call.1} parent=1 // loop_pre_header
      _
    $region3: #{tpu_custom_call.1} parent=1 // loop_header
      %s10 = sphi 0, %s14
      %p11 = scmp.ge.s32.totalorder %s10, 4
      %s17 = sphi 0, %s29
      %s18 = sphi 0, %s25
      %s19 = sphi 0, %s17
      %s20 = sphi 0, %s18
      %s21 = sphi 0, %s19
      %s22 = sphi 0, %s20
      %s34 = sphi 0, %s36
      %s37 = sphi 0, %s34
      %s38 = sphi 0, %s37
      %s54 = sphi 0, %s38
      %s62 = sphi 0, %s64
      %s65 = sphi 0, %s62
      %s66 = sphi 0, %s65
      %s82 = sphi 0, %s66
    $region4: #{tpu_custom_call.1} parent=1 // loop_header_branch
      %13 = sbr.rel (%p11) target = $region8
    $region5: #{tpu_custom_call.1} parent=1 // loop_body
      %s15 = ssub.s32 %s10, 1
      %s16 = ssub.s32 %s10, 2
      %s23 = sadd.s32 1, %s18
      %p24 = scmp.ge.s32.totalorder %s23, 1
      %s25 = scalar_select %p24, 0, %s23
      %s26 = sadd.s32 1, %s17
      %s27 = scalar_select %p24, %s26, %s17
      %p28 = scmp.ge.s32.totalorder %s27, 2
      %s29 = scalar_select %p28, 0, %s27
      %s30 = ssub.s32 %s17, %s29
      %s31 = ssub.s32 %s18, %s25
      %s32 = sor.u32 %s30, %s31
      %p33 = scmp.eq.s32.totalorder %s32, 0
      %s35 = sadd.s32 %s34, 1
      %s36 = scalar_select %p33, %s34, %s35
      %p39 = pneg %p33
      %p40 = scmp.eq.s32.totalorder %s10, 1
      %p41 = por %p39, %p40
      %p42 = scmp.ne.s32.totalorder %s34, %s37
      %p43 = scmp.eq.s32.totalorder %s10, 0
      %p44 = por %p42, %p43
      %p45 = scmp.ne.s32.totalorder %s34, %s37
      %p46 = scmp.eq.s32.totalorder %s15, 1
      %p47 = por %p45, %p46
      %p48 = scmp.ne.s32.totalorder %s37, %s38
      %p49 = scmp.eq.s32.totalorder %s15, 0
      %p50 = por %p48, %p49
      %p51 = scmp.ne.s32.totalorder %s37, %s38
      %p52 = scmp.eq.s32.totalorder %s16, 1
      %p53 = por %p51, %p52
      %p55 = scmp.ne.s32.totalorder %s38, %s54
      %p56 = scmp.eq.s32.totalorder %s16, 0
      %p57 = por %p55, %p56
      %s58 = ssub.s32 %s17, %s29
      %s59 = ssub.s32 %s18, %s25
      %s60 = sor.u32 %s58, %s59
      %p61 = scmp.eq.s32.totalorder %s60, 0
      %s63 = sadd.s32 %s62, 1
      %s64 = scalar_select %p61, %s62, %s63
      %p67 = pneg %p61
      %p68 = scmp.eq.s32.totalorder %s10, 1
      %p69 = por %p67, %p68
      %p70 = scmp.ne.s32.totalorder %s62, %s65
      %p71 = scmp.eq.s32.totalorder %s10, 0
      %p72 = por %p70, %p71
      %p73 = scmp.ne.s32.totalorder %s62, %s65
      %p74 = scmp.eq.s32.totalorder %s15, 1
      %p75 = por %p73, %p74
      %p76 = scmp.ne.s32.totalorder %s65, %s66
      %p77 = scmp.eq.s32.totalorder %s15, 0
      %p78 = por %p76, %p77
      %p79 = scmp.ne.s32.totalorder %s65, %s66
      %p80 = scmp.eq.s32.totalorder %s16, 1
      %p81 = por %p79, %p80
      %p83 = scmp.ne.s32.totalorder %s66, %s82
      %p84 = scmp.eq.s32.totalorder %s16, 0
      %p85 = por %p83, %p84
      %p86 = scmp.le.s32.totalorder 1, %s10
      %p87 = scmp.lt.s32.totalorder %s10, 3
      %p88 = pnand %p86, %p87
      %p89 = pneg %p88
      // Predicated region
      $region9: #{tpu_custom_call.1} parent=5 // pred_check
        _
      $region10: #{tpu_custom_call.1} parent=5 // pred_check_branch
        %91 = sbr.rel (%p88) target = $region12
      $region11: #{tpu_custom_call.1} parent=5 // pred_region
        %s92 = ssub.s32 %s10, 1
      $region12: #{tpu_custom_call.1} parent=5 // pred_fallthru
        _
      %p93 = scmp.lt.s32.totalorder %s10, 2
      // Predicated region
      $region13: #{tpu_custom_call.1} parent=5 // pred_check
        %p94 = pneg %p93
      $region14: #{tpu_custom_call.1} parent=5 // pred_check_branch
        %96 = sbr.rel (%p94) target = $region16
      $region15: #{tpu_custom_call.1} parent=5 // pred_region
        // Predicated region
        $region17: #{tpu_custom_call.1} parent=15 // pred_check
          %p97 = pneg %p44
        $region18: #{tpu_custom_call.1} parent=15 // pred_check_branch
          %99 = sbr.rel (%p97) target = $region20
        $region19: #{tpu_custom_call.1} parent=15 // pred_region
          %s100 = sand.u32 %s34, 1
          %s101 = scalar_lea.sflag [#allocation3], %s100
          %s102 = sand.u32 %s34, 1
          %s103 = smul.addr %s102, 8
          %s104 = scalar_lea.vmem [#allocation2], %s103
          %s106 = ssub.s32 128, 128
          %107 = vsyncadd %s101, %s106
          %s108 = sadd.s32 %s18, %s17
          %s109 = smul.addr %s108, 128
          %s110 = scalar_lea.hbm %s0, %s109
          %s112 = sshll.u32 %s104, 4
          %s113 = int_to_ptr.vmem [resolvable:$true] %s112
          %115 = dma.hbm_to_vmem [thread:$0]  %s110, 128, %s113, %s101
        $region20: #{tpu_custom_call.1} parent=15 // pred_fallthru
          _
      $region16: #{tpu_custom_call.1} parent=5 // pred_fallthru
        _
      %p116 = scmp.le.s32.totalorder 1, %s10
      %p117 = scmp.lt.s32.totalorder %s10, 3
      %p118 = pnand %p116, %p117
      %p119 = pneg %p118
      // Predicated region
      $region21: #{tpu_custom_call.1} parent=5 // pred_check
        _
      $region22: #{tpu_custom_call.1} parent=5 // pred_check_branch
        %121 = sbr.rel (%p118) target = $region24
      $region23: #{tpu_custom_call.1} parent=5 // pred_region
        %s122 = ssub.s32 %s10, 1
        %s123 = sand.u32 %s37, 1
        %s124 = scalar_lea.sflag [#allocation3], %s123
        %s125 = sand.u32 %s37, 1
        %s126 = smul.addr %s125, 8
        %s127 = scalar_lea.vmem [#allocation2], %s126
        // Predicated region
        $region25: #{tpu_custom_call.1} parent=23 // pred_check
          %p128 = pneg %p50
        $region26: #{tpu_custom_call.1} parent=23 // pred_check_branch
          %130 = sbr.rel (%p128) target = $region28
        $region27: #{tpu_custom_call.1} parent=23 // pred_region
          %131 = dma.done %s124, 128
        $region28: #{tpu_custom_call.1} parent=23 // pred_fallthru
          _
        %s132 = sand.u32 %s37, 1
        %s133 = scalar_lea.sflag [#allocation3], %s132
        %s134 = sand.u32 %s37, 1
        %s135 = smul.addr %s134, 8
        %s136 = scalar_lea.vmem [#allocation2], %s135
        %p137 = pneg %p50
        %p138 = pneg %p47
        %p139 = pneg %p78
        %p140 = pneg %p75
        %p141 = scmp.lt.s32.totalorder %s19, 1
        %s142 = scalar_select %p141, %s19, 1
        %p143 = scmp.lt.s32.totalorder %s20, 0
        %s144 = scalar_select %p143, %s20, 0
        %s145 = sadd.s32 %s144, %s142
        %s146 = smul.addr %s145, 8
        %s147 = scalar_lea.vmem %s1, %s146
        %p148 = scmp.lt.s32.totalorder %s19, 1
        %s149 = scalar_select %p148, %s19, 1
        %p150 = scmp.lt.s32.totalorder %s20, 0
        %s151 = scalar_select %p150, %s20, 0
        %s152 = sadd.s32 %s151, %s149
        %s153 = smul.addr %s152, 8
        %s154 = scalar_lea.vmem %s1, %s153
        %v155 = vld [vmem:[%s127] sm:$0xff]
        %v156 = vmul.f32 %v155, %v155
        %157 = vadd.xlane.f32.xlu0 %v156
        %v158 = vpop.xlane.xlu0 %157
        %v159 = vrsqrt.pop %v158
        %v160 = vmul.f32 %v158, %v159
        %vm161 = vcmp.eq.f32.partialorder %v158, inf
        %v162 = vsel %vm161, %v158, %v160
        %vm163 = vcmp.eq.f32.partialorder %v158, 0.0
        %v164 = vand.u32 %v158, 2147483648
        %v165 = vsel %vm163, %v164, %v162
        %v166 = vmax.f32 %v165, 1e-12
        %v167 = vrcp.pop %v166
        %v168 = vmul.f32 1.0, %v167
        %vm169 = vcmask 7168
        %170 = vst.msk [vmem:[%s154] sm:$0xff] %vm169, %v168
        %p171 = scmp.lt.s32.totalorder %s19, 1
        %s172 = scalar_select %p171, %s19, 1
        %p173 = scmp.lt.s32.totalorder %s20, 0
        %s174 = scalar_select %p173, %s20, 0
        %s175 = sadd.s32 %s174, %s172
        %s176 = smul.addr %s175, 8
        %s177 = scalar_lea.vmem %s1, %s176
        // Predicated region
        $region29: #{tpu_custom_call.1} parent=23 // pred_check
          %p178 = pneg %p75
        $region30: #{tpu_custom_call.1} parent=23 // pred_check_branch
          %180 = sbr.rel (%p178) target = $region32
        $region31: #{tpu_custom_call.1} parent=23 // pred_region
          _
        $region32: #{tpu_custom_call.1} parent=23 // pred_fallthru
          _
      $region24: #{tpu_custom_call.1} parent=5 // pred_fallthru
        _
      %p181 = scmp.le.s32.totalorder 2, %s10
      // Predicated region
      $region33: #{tpu_custom_call.1} parent=5 // pred_check
        %p182 = pneg %p181
      $region34: #{tpu_custom_call.1} parent=5 // pred_check_branch
        %184 = sbr.rel (%p182) target = $region36
      $region35: #{tpu_custom_call.1} parent=5 // pred_region
        %s185 = ssub.s32 %s10, 2
        // Predicated region
        $region37: #{tpu_custom_call.1} parent=35 // pred_check
          %p186 = pneg %p81
        $region38: #{tpu_custom_call.1} parent=35 // pred_check_branch
          %188 = sbr.rel (%p186) target = $region40
        $region39: #{tpu_custom_call.1} parent=35 // pred_region
          %p189 = scmp.lt.s32.totalorder %s21, 1
          %s190 = scalar_select %p189, %s21, 1
          %p191 = scmp.lt.s32.totalorder %s22, 0
          %s192 = scalar_select %p191, %s22, 0
          %s193 = sadd.s32 %s192, %s190
          %s194 = smul.addr %s193, 8
          %s195 = scalar_lea.vmem %s1, %s194
        $region40: #{tpu_custom_call.1} parent=35 // pred_fallthru
          _
      $region36: #{tpu_custom_call.1} parent=5 // pred_fallthru
        _
    $region6: #{tpu_custom_call.1} parent=1 // loop_footer
      %s14 = sadd.s32 1, %s10
    $region7: #{tpu_custom_call.1} parent=1 // loop_footer_branch
      %9 = sbr.rel target = $region3
    $region8: #{tpu_custom_call.1} parent=1 // loop_exit
      _
    %196 = vsyncpa [#allocation3], 1
    %s197 = scalar_lea.sflag [#allocation3], 1
    %198 = vsyncpa %s197, 1

</llo_original>
